<compile_context>
chip_gen: v7x
topology: tpu7x:2x2x1
jax: 0.10.0
libtpu: 0.0.40
codegen_flags: <defaults>
</compile_context>

<pallas_src>
import time
from functools import lru_cache, partial

import jax
import jax.numpy as jnp
from jax.experimental import pallas as pl
from jax.experimental.pallas import tpu as pltpu


# ----------------------------------------------------------------------------
# Pallas kernel: identity pass-through (the base stage's forward hot path).
# ----------------------------------------------------------------------------
def _passthrough_kernel(x_ref, o_ref):
    # Whole-tile copy; memory-bound, no transform for the abstract base stage.
    o_ref[...] = x_ref[...]


_LANE = 128


def _sublane(dtype) -> int:
    # dtype-aware sublane multiple: 8 for 4-byte, 16 for 2-byte, 32 for 1-byte.
    itemsize = jnp.dtype(dtype).itemsize
    return max(8, 32 // itemsize)


@lru_cache(maxsize=1)
def _budgets() -> tuple[int, int]:
    """(per-tile byte budget, vmem_limit_bytes), derived from device VMEM.

    Footprint = 2 arrays (in+out) x 2 pipeline buffers x tile:
      v7x  (64 MiB/TC VMEM): tile  8 MiB -> footprint 32 MiB, limit 48 MiB
      v6e  (128 MiB VMEM)  : tile 16 MiB -> footprint 64 MiB, limit 96 MiB
      v5e  (128 MiB VMEM)  : same as v6e (explicit limit overrides the 16 MiB
                             scoped default).
    """
    try:
        cap = int(pltpu.get_tpu_info().vmem_capacity_bytes)
    except Exception:  # pragma: no cover - conservative fallback
        cap = 64 * 1024 * 1024
    tile = max(4 * 1024 * 1024, min(16 * 1024 * 1024, cap // 8))
    limit = min(cap * 3 // 4, 6 * tile)
    limit = max(limit, 4 * tile)  # never below the double-buffered footprint
    return tile, limit


def _lane_dense_shape(shape, dtype) -> tuple[int, int]:
    """Pick a 2D (rows, cols) view of the flat element count with a lane-dense
    last dim (large multiple of 128) whenever possible."""
    total = 1
    for d in shape:
        total *= int(d)
    item = jnp.dtype(dtype).itemsize
    sub = _sublane(dtype)
    tile_budget, _ = _budgets()
    max_cols = max(_LANE, (tile_budget // (sub * item)) // _LANE * _LANE)

    if total % _LANE == 0:
        # cols = 128 * (largest divisor of total/128 that keeps cols <= max_cols)
        rows0 = total // _LANE
        cap = max(1, max_cols // _LANE)
        best = 1
        i = 1
        while i * i <= rows0:
            if rows0 % i == 0:
                for cand in (i, rows0 // i):
                    if cand <= cap and cand > best:
                        best = cand
            i += 1
        cols = _LANE * best
        return total // cols, cols

    # Fallback: exact (leading, trailing) split; the block chooser guards the
    # budget even when cols is wide and not a multiple of 128.
    cols = int(shape[-1])
    return total // cols, cols


def _choose_block(rows: int, cols: int, dtype) -> tuple[int, int]:
    """Largest (block_rows, block_cols) fitting the per-tile VMEM budget."""
    item = jnp.dtype(dtype).itemsize
    sub = _sublane(dtype)
    tile_budget, _ = _budgets()

    if sub * cols * item <= tile_budget:
        bc = cols  # full column extent fits one sublane-stripe: no tiling needed
    else:
        # Tile columns with a 128-multiple block (ragged last tile is masked);
        # this also covers wide non-128-multiple columns without blowing VMEM.
        bc = min(cols, max(_LANE, (tile_budget // (sub * item)) // _LANE * _LANE))

    max_r = max(sub, (tile_budget // (bc * item)) // sub * sub)
    br = rows if rows <= max_r else max_r

    # Ensure >= 2 grid steps for arrays bigger than one tile so v7x's second
    # TensorCore (2 TCs/chip) gets work on the "parallel" grid axes.
    nblocks = pl.cdiv(rows, br) * pl.cdiv(cols, bc)
    if nblocks < 2 and rows * cols * item > tile_budget and rows > sub:
        half = max(sub, ((rows + 1) // 2 + sub - 1) // sub * sub)
        if half < rows:
            br = half
    return br, bc


def _passthrough_2d(x2d, *, alias: bool):
    """Tiled identity over a (rows, cols) array."""
    rows, cols = x2d.shape
    br, bc = _choose_block(rows, cols, x2d.dtype)
    grid = (pl.cdiv(rows, br), pl.cdiv(cols, bc))
    nbytes = rows * cols * jnp.dtype(x2d.dtype).itemsize
    _, vmem_limit = _budgets()

    extra = {}
    if alias:
        # Only emitted on the genuinely-donated jit path; without donation XLA
        # would insert a defensive copy (a whole extra HBM pass).
        extra["input_output_aliases"] = {0: 0}

    return pl.pallas_call(
        _passthrough_kernel,
        out_shape=jax.ShapeDtypeStruct((rows, cols), x2d.dtype),
        grid=grid,
        in_specs=[pl.BlockSpec((br, bc), lambda i, j: (i, j))],
        out_specs=pl.BlockSpec((br, bc), lambda i, j: (i, j)),
        compiler_params=pltpu.CompilerParams(
            dimension_semantics=("parallel", "parallel"),
            vmem_limit_bytes=vmem_limit,
        ),
        cost_estimate=pl.CostEstimate(
            flops=0, transcendentals=0, bytes_accessed=2 * nbytes
        ),
        **extra,
    )(x2d)


def _identity_impl(x, *, alias: bool):
    rows, cols = _lane_dense_shape(x.shape, x.dtype)
    x2d = x.reshape(rows, cols)          # layout no-op under jit
    y2d = _passthrough_2d(x2d, alias=alias)
    return y2d.reshape(x.shape)          # layout no-op under jit


# Single jitted executable per (shape, dtype): reshapes fuse around the custom
# call, no extra HBM buffers, one dispatch per forward.
_identity_jit = jax.jit(partial(_identity_impl, alias=False))
_identity_jit_donated = jax.jit(partial(_identity_impl, alias=True), donate_argnums=(0,))


# ----------------------------------------------------------------------------
# JAX/Pallas port of BaseStage (host-side bookkeeping kept in plain Python).
# ----------------------------------------------------------------------------
class BaseStage:
    """处理阶段基类 (JAX/Pallas port)."""

    def __init__(self, name: str, device: str, node_comm=None, profile: bool = False):
        self.name = name
        self.device = device
        self.node_comm = node_comm
        self.training = True
        self.profile = profile  # host-sync timing is opt-in only (perf)
        self.compute_time = 0.0
        self.transfer_time = 0.0
        self.batch_count = 0
        self.last_error = None
        self.comm_success_count = 0
        self.comm_failure_count = 0
        self._tag_counter = 1000
        # No learnable parameters in the base stage (__init__ defines none).
        # TODO(synk): worker threads / queues / logging / node_comm of the
        # reference are host-side concurrency with no Pallas equivalent.

    # ---- tag / stats bookkeeping (direct ports) -----------------------------
    def next_tag(self, step=1):
        current = self._tag_counter
        self._tag_counter += step
        return current

    def reset_tag_counter(self):
        self._tag_counter = 1000

    def train(self, mode=True):
        self.training = mode
        return self

    def eval(self):
        self.training = False
        return self

    def reset_stats(self):
        self.compute_time = 0.0
        self.transfer_time = 0.0
        self.batch_count = 0

    def get_stats(self):
        avg_compute = self.compute_time / max(1, self.batch_count)
        avg_transfer = self.transfer_time / max(1, self.batch_count)
        return {
            "name": self.name,
            "device": self.device,
            "avg_compute_ms": avg_compute * 1000,
            "avg_transfer_ms": avg_transfer * 1000,
            "batch_count": self.batch_count,
            "last_error": str(self.last_error) if self.last_error else None,
        }

    def update_comm_stats(self, success: bool):
        if success:
            self.comm_success_count += 1
        else:
            self.comm_failure_count += 1

    def get_state_dict_prefix(self):
        return {}

    # ---- device-side path ----------------------------------------------------
    def process(self, *args, **kwargs):
        return self.forward(*args, **kwargs)

    def forward(self, x, donate_input: bool = False, short_circuit: bool = False):
        # TODO(synk): reference BaseStage.forward raises NotImplementedError
        # (abstract); identity pass-through is the only base-class-faithful
        # device op — concrete subclasses override this with real compute.
        if short_circuit:
            # A production pass-through stage should cost nothing: skip the
            # kernel entirely (kept off by default so this script exercises it).
            self.batch_count += 1
            return x
        t0 = time.perf_counter() if self.profile else None
        fn = _identity_jit_donated if donate_input else _identity_jit
        y = fn(x)
        if self.profile:
            # Host timing only when explicitly profiling; it serializes
            # dispatch and over-counts — prefer an xprof trace for real data.
            y = jax.block_until_ready(y)
            self.compute_time += time.perf_counter() - t0
        self.batch_count += 1
        return y


if __name__ == "__main__":
    key = jax.random.PRNGKey(0)
    # Small NCHW activation consistent with the pipeline-stage use case.
    x = jax.random.normal(key, (2, 4, 16, 16), dtype=jnp.float32)

    stage = BaseStage(name="base", device="tpu")
    stage.reset_tag_counter()
    _ = stage.next_tag()

    # f32 path.
    y = jax.block_until_ready(stage.forward(x))
    assert y.shape == x.shape and y.dtype == x.dtype
    assert bool(jnp.array_equal(y, x))

    # bf16 path exercises the dtype-aware sublane tiling.
    xb = x.astype(jnp.bfloat16)
    yb = jax.block_until_ready(stage.forward(xb))
    assert yb.dtype == xb.dtype and bool(jnp.array_equal(yb, xb))

    # Donated (in-place identity, genuinely aliased under jit) path.
    x2 = x + 1.0
    expected = x + 1.0
    y2 = jax.block_until_ready(stage.forward(x2, donate_input=True))
    assert bool(jnp.allclose(y2, expected))

    # Short-circuit path (what a real pipeline pass-through would do).
    y3 = stage.forward(x, short_circuit=True)
    assert y3 is x

    print("KERNEL_OK")
</pallas_src>

<mosaic_0001>
module attributes {stable_mosaic.version = 11 : i64} {
  func.func @_passthrough_kernel(%arg0: i32, %arg1: i32, %arg2: memref<1x2048xf32, #tpu.memory_space<vmem>>, %arg3: memref<1x2048xf32, #tpu.memory_space<vmem>>) attributes {dimension_semantics = [#tpu.dimension_semantics<parallel>, #tpu.dimension_semantics<parallel>], iteration_bounds = array<i64: 1, 1>, scalar_prefetch = 0 : i64, scratch_operands = 0 : i64, tpu.core_type = #tpu.core_type<tc>, window_params = [{transform_indices = @transform_0, window_bounds = array<i64: 1, 2048>}, {transform_indices = @transform_1, window_bounds = array<i64: 1, 2048>}]} {
    %c0 = arith.constant 0 : index
    %c0_0 = arith.constant 0 : index
    %0 = vector.load %arg2[%c0, %c0_0] : memref<1x2048xf32, #tpu.memory_space<vmem>>, vector<1x2048xf32>
    %c0_1 = arith.constant 0 : index
    %c0_2 = arith.constant 0 : index
    %1 = vector.load %arg3[%c0_1, %c0_2] : memref<1x2048xf32, #tpu.memory_space<vmem>>, vector<1x2048xf32>
    tpu.vector_store %arg3[%c0_1, %c0_2], %0 {strides = array<i32>} : memref<1x2048xf32, #tpu.memory_space<vmem>>, vector<1x2048xf32>,
    return
  }
  func.func @transform_0(%arg0: i32, %arg1: i32) -> (i32, i32) {
    %c0_i32 = arith.constant 0 : i32
    return %arg0, %arg1 : i32, i32
  }
  func.func @transform_1(%arg0: i32, %arg1: i32) -> (i32, i32) {
    %c0_i32 = arith.constant 0 : i32
    return %arg0, %arg1 : i32, i32
  }
}

</mosaic_0001>

<llo_original>
// kernel: _identity_impl.1
$region0: #{_identity_impl.1}
  #allocation0 [shape = 'u32[]', space=smem, size = 0x4, offset = 0x4, fixed_abs, tag = 'smem constant byte address 0x4 - core index']
  #allocation1 [shape = 'u32[144,128]{1,0:T(1,128)}', space=vmem, size = 0x12000, scoped, tag = 'internal scratch']
  %s0 = inlined_call_operand.vmem [shape: f32[1,2048], index: 0, kind: input, shape index: {}]
  %s1 = inlined_call_operand.vmem [shape: f32[1,2048], index: 1, kind: output, shape index: {}]
  %s2 = sld [smem:[#allocation0]]
  $region14: #{_identity_impl.1} parent=0
    _
  %s4 = ssub.s32 1, %s2
  %s5 = scalar_select 0, %s4, %s2
  // Predicated region
  $region2: #{_identity_impl.1} parent=0 // pred_check
    _
  $region3: #{_identity_impl.1} parent=0 // pred_check_branch
    %7 = sbr.rel (0) target = $region5
  $region4: #{_identity_impl.1} parent=0 // pred_region
    _
  $region5: #{_identity_impl.1} parent=0 // pred_fallthru
    _
  %v8 = vld [vmem:[%s0] sm:$0xff]
  %v9 = vld [vmem:[%s0 + $0x8] sm:$0xff]
  %10 = vst [vmem:[%s1] sm:$0xff] %v8
  %11 = vst [vmem:[%s1 + $0x8] sm:$0xff] %v9
  // Predicated region
  $region6: #{_identity_impl.1} parent=0 // pred_check
    _
  $region7: #{_identity_impl.1} parent=0 // pred_check_branch
    %13 = sbr.rel (0) target = $region9
  $region8: #{_identity_impl.1} parent=0 // pred_region
    _
  $region9: #{_identity_impl.1} parent=0 // pred_fallthru
    _
  // Predicated region
  $region10: #{_identity_impl.1} parent=0 // pred_check
    _
  $region11: #{_identity_impl.1} parent=0 // pred_check_branch
    %15 = sbr.rel (0) target = $region13
  $region12: #{_identity_impl.1} parent=0 // pred_region
    _
  $region13: #{_identity_impl.1} parent=0 // pred_fallthru
    _

</llo_original>
